<compile_context>
chip_gen: v7x
topology: tpu7x:2x2x1
jax: 0.10.0
libtpu: 0.0.40
codegen_flags: <defaults>
</compile_context>

<pallas_src>
import functools

import jax
import jax.numpy as jnp
from jax.experimental import pallas as pl
from jax.experimental.pallas import tpu as pltpu


def _round_up(x, m):
    return ((x + m - 1) // m) * m


def _sublane(dtype):
    # dtype-native sublane tile: 8 rows for 4-byte, 16 for 2-byte, 32 for 1-byte dtypes.
    return max(8, 32 // jnp.dtype(dtype).itemsize)


def _vmem_capacity_bytes():
    # Trace-time hardware query; conservative fallback (v7x-sized) if unavailable.
    try:
        cap = int(getattr(pltpu.get_tpu_info(), "vmem_capacity_bytes"))
        if cap > 0:
            return cap
    except Exception:
        pass
    return 64 << 20


def _tree_sum(parts):
    # Pairwise (log-depth) reduction of a list of equal-shaped f32 arrays.
    while len(parts) > 1:
        nxt = [a + b for a, b in zip(parts[0::2], parts[1::2])]
        if len(parts) % 2:
            nxt.append(parts[-1])
        parts = nxt
    return parts[0]


def _sum_all_kernel(z_ref, out_ref, *, num_meta, dpad):
    # z_ref:   (TN, M*Dp)  -- metapath axis folded into lanes, Dp a multiple of 128
    # out_ref: (TN, Dp)
    # Upcast each lane-aligned Dp-wide slice to f32 and tree-sum (no full-block f32 copy).
    parts = [z_ref[:, m * dpad:(m + 1) * dpad].astype(jnp.float32)
             for m in range(num_meta)]
    out_ref[...] = _tree_sum(parts).astype(out_ref.dtype)


def _sum_chunk_kernel(z_ref, out_ref, acc_ref, *, meta_per_chunk, dpad):
    # Metapath-chunked variant: grid = (N-tiles, M-chunks), M axis is "arbitrary".
    # acc_ref is a (TN, Dp) f32 VMEM accumulator that lives across the chunk axis.
    k = pl.program_id(1)

    @pl.when(k == 0)
    def _():
        acc_ref[...] = jnp.zeros_like(acc_ref)

    parts = [z_ref[:, m * dpad:(m + 1) * dpad].astype(jnp.float32)
             for m in range(meta_per_chunk)]
    acc_ref[...] += _tree_sum(parts)

    @pl.when(k == pl.num_programs(1) - 1)
    def _():
        out_ref[...] = acc_ref[...].astype(out_ref.dtype)


def semantic_attention(z, w1=None, b1=None, w2=None, *, block_rows=None):
    """Forward pass of HAN SemanticAttention.

    z: (N, M, D).  w1/b1/w2 are the project() parameters; since beta == 1 exactly
    (softmax over a size-1 dim) they do not influence the output and are not read.
    """
    del w1, b1, w2  # dead w.r.t. the output (beta == 1 exactly); kept for API parity.
    N, M, D = z.shape
    dtype = z.dtype
    itemsize = jnp.dtype(dtype).itemsize
    sub = _sublane(dtype)

    # ---- lane-dense feature axis: pad D up to a multiple of 128 (zeros are exact). ----
    Dp = _round_up(D, 128)
    if Dp != D:
        z = jnp.pad(z, ((0, 0), (0, 0), (0, Dp - D)))

    # ---- generation-aware budgets. ----
    vmem_cap = _vmem_capacity_bytes()
    if vmem_cap <= (64 << 20):      # v7x-class: 64 MiB physical VMEM, 3.2 TB/s HBM
        in_budget = 14 << 20
    else:                           # v5e / v6e: 128 MiB VMEM
        in_budget = 20 << 20

    # ---- metapath chunking: guard rows that would blow the budget and bound unroll. ----
    max_meta_chunk = 32
    meta_budget = max(1, in_budget // max(1, sub * Dp * itemsize))
    chunk0 = max(1, min(M, max_meta_chunk, meta_budget))
    n_mchunks = pl.cdiv(M, chunk0)
    meta_per_chunk = pl.cdiv(M, n_mchunks)          # balance chunks, minimize padding
    Mp = meta_per_chunk * n_mchunks
    if Mp != M:
        z = jnp.pad(z, ((0, 0), (0, Mp - M), (0, 0)))   # zero metapaths: exact for a sum
    chunk_row_bytes = meta_per_chunk * Dp * itemsize

    # Fold the metapath axis into the lane axis (contiguous reshape in the wrapper):
    # the M-reduction becomes lane-aligned slice adds inside the kernel.
    zf = z.reshape(N, Mp * Dp)

    # ---- rows per block: big tiles, but always >= ~4 grid steps and VMEM-safe. ----
    per_row_live_bytes = (2 * chunk_row_bytes               # double-buffered input block
                          + 2 * Dp * itemsize               # double-buffered output block
                          + (4 * Dp if n_mchunks > 1 else 0))  # f32 accumulator scratch
    max_tn = max(sub, int((vmem_cap - (16 << 20)) // max(1, per_row_live_bytes)))

    if block_rows is None:
        block_rows = max(sub, in_budget // max(1, chunk_row_bytes))
    tn = min(N, int(block_rows), max_tn)
    if N > sub:
        # Guarantee several steps along N so dual-TC sharding (v7x) and pipelining engage.
        tn = min(tn, max(sub, pl.cdiv(N, 4)))
    if tn < N:
        tn = max(sub, (tn // sub) * sub)   # dtype-native sublane alignment
    nb = pl.cdiv(N, tn)

    # ---- explicit VMEM limit, clamped to the device (headroom for internal scratch). ----
    in_block_bytes = tn * chunk_row_bytes
    out_block_bytes = tn * Dp * itemsize
    acc_bytes = tn * Dp * 4 if n_mchunks > 1 else 0
    needed = 2 * in_block_bytes + 2 * out_block_bytes + acc_bytes
    vmem_limit = int(min(vmem_cap - (8 << 20), max(32 << 20, 2 * needed)))

    # Advisory cost estimate: pure HBM streaming, (M+1) x N x D elements moved.
    cost = pl.CostEstimate(
        flops=max(0, N * (Mp - 1) * Dp),
        transcendentals=0,
        bytes_accessed=N * Dp * (Mp + 1) * itemsize,
    )

    if n_mchunks == 1:
        # Common path: whole (folded) row fits the budget; single "parallel" grid axis.
        kernel = functools.partial(_sum_all_kernel, num_meta=Mp, dpad=Dp)
        out = pl.pallas_call(
            kernel,
            out_shape=jax.ShapeDtypeStruct((N, Dp), dtype),
            grid=(nb,),
            in_specs=[pl.BlockSpec((tn, Mp * Dp), lambda i: (i, 0))],
            out_specs=pl.BlockSpec((tn, Dp), lambda i: (i, 0)),
            compiler_params=pltpu.CompilerParams(
                dimension_semantics=("parallel",),
                vmem_limit_bytes=vmem_limit,
            ),
            cost_estimate=cost,
        )(zf)
    else:
        # Fallback path: also tile the folded metapath axis ("arbitrary" reduction axis)
        # with a pl.when-managed f32 accumulator in VMEM scratch.
        kernel = functools.partial(_sum_chunk_kernel,
                                   meta_per_chunk=meta_per_chunk, dpad=Dp)
        out = pl.pallas_call(
            kernel,
            out_shape=jax.ShapeDtypeStruct((N, Dp), dtype),
            grid=(nb, n_mchunks),
            in_specs=[pl.BlockSpec((tn, meta_per_chunk * Dp), lambda i, k: (i, k))],
            out_specs=pl.BlockSpec((tn, Dp), lambda i, k: (i, 0)),
            scratch_shapes=[pltpu.VMEM((tn, Dp), jnp.float32)],
            compiler_params=pltpu.CompilerParams(
                dimension_semantics=("parallel", "arbitrary"),
                vmem_limit_bytes=vmem_limit,
            ),
            cost_estimate=cost,
        )(zf)

    if Dp != D:
        out = out[:, :D]
    return out


def semantic_attention_reference(z, w1, b1, w2):
    # Pure-JAX mirror of the torch forward, INCLUDING the projection + softmax,
    # to verify that eliding them in the kernel is exact.
    h = jnp.tanh(jnp.einsum("nmd,dh->nmh", z, w1) + b1[0])   # (N, M, H)
    s = jnp.einsum("nmh,h->nm", h, w2[0])                    # (N, M)
    w = jnp.mean(s, axis=0)[:, None]                         # (M, 1)  torch layout
    beta = jax.nn.softmax(w, axis=1)                         # (M, 1)  size-1 softmax -> ones
    return jnp.sum(beta[None, :, :] * z, axis=1)             # (N, D)


if __name__ == "__main__":
    key = jax.random.PRNGKey(0)
    kz, kw1, kb1, kw2, kz2 = jax.random.split(key, 5)

    # ---- main config: nodes, metapaths, in_size, hidden_size ----
    N, M, D, H = 512, 4, 128, 32
    z = jax.random.normal(kz, (N, M, D), dtype=jnp.float32)

    # torch.nn.Linear-style U(-1/sqrt(fan_in), 1/sqrt(fan_in)) init (transposed layout).
    lim1 = 1.0 / jnp.sqrt(jnp.float32(D))
    w1 = jax.random.uniform(kw1, (D, H), jnp.float32, -lim1, lim1)   # Linear(D, H).weight.T
    b1 = jax.random.uniform(kb1, (1, H), jnp.float32, -lim1, lim1)   # Linear(D, H).bias
    lim2 = 1.0 / jnp.sqrt(jnp.float32(H))
    w2 = jax.random.uniform(kw2, (1, H), jnp.float32, -lim2, lim2)   # Linear(H, 1, bias=False).weight

    # block_rows=128 -> grid=(4,), exercising the pipelined / multi-tile "parallel" path.
    out = jax.block_until_ready(semantic_attention(z, w1, b1, w2, block_rows=128))
    ref = semantic_attention_reference(z, w1, b1, w2)
    assert out.shape == (N, D)
    assert jnp.allclose(out, ref, atol=1e-5, rtol=1e-5), "mismatch vs full reference"

    # ---- secondary config: D % 128 != 0 (lane padding) and M > 32 (metapath chunking). ----
    N2, M2, D2 = 96, 40, 96
    z2 = jax.random.normal(kz2, (N2, M2, D2), dtype=jnp.float32)
    out2 = jax.block_until_ready(semantic_attention(z2))
    ref2 = jnp.sum(z2, axis=1)
    assert out2.shape == (N2, D2)
    assert jnp.allclose(out2, ref2, atol=1e-4, rtol=1e-5), "mismatch on padded/chunked path"

    print("KERNEL_OK")
</pallas_src>

<mosaic_0001>
module attributes {stable_mosaic.version = 11 : i64} {
  func.func @_sum_all_kernel(%arg0: i32, %arg1: memref<128x512xf32, #tpu.memory_space<vmem>>, %arg2: memref<128x128xf32, #tpu.memory_space<vmem>>) attributes {dimension_semantics = [#tpu.dimension_semantics<parallel>], iteration_bounds = array<i64: 4>, scalar_prefetch = 0 : i64, scratch_operands = 0 : i64, tpu.core_type = #tpu.core_type<tc>, window_params = [{transform_indices = @transform_0, window_bounds = array<i64: 128, 512>}, {transform_indices = @transform_1, window_bounds = array<i64: 128, 128>}]} {
    %c0 = arith.constant 0 : index
    %c0_0 = arith.constant 0 : index
    %0 = vector.load %arg1[%c0, %c0_0] : memref<128x512xf32, #tpu.memory_space<vmem>>, vector<128x128xf32>
    %c0_1 = arith.constant 0 : index
    %c128 = arith.constant 128 : index
    %1 = vector.load %arg1[%c0_1, %c128] : memref<128x512xf32, #tpu.memory_space<vmem>>, vector<128x128xf32>
    %c0_2 = arith.constant 0 : index
    %c256 = arith.constant 256 : index
    %2 = vector.load %arg1[%c0_2, %c256] : memref<128x512xf32, #tpu.memory_space<vmem>>, vector<128x128xf32>
    %c0_3 = arith.constant 0 : index
    %c384 = arith.constant 384 : index
    %3 = vector.load %arg1[%c0_3, %c384] : memref<128x512xf32, #tpu.memory_space<vmem>>, vector<128x128xf32>
    %4 = arith.addf %0, %1 : vector<128x128xf32>
    %5 = arith.addf %2, %3 : vector<128x128xf32>
    %6 = arith.addf %4, %5 : vector<128x128xf32>
    %c0_4 = arith.constant 0 : index
    %c0_5 = arith.constant 0 : index
    %7 = vector.load %arg2[%c0_4, %c0_5] : memref<128x128xf32, #tpu.memory_space<vmem>>, vector<128x128xf32>
    tpu.vector_store %arg2[%c0_4, %c0_5], %6 {strides = array<i32>} : memref<128x128xf32, #tpu.memory_space<vmem>>, vector<128x128xf32>,
    return
  }
  func.func @transform_0(%arg0: i32) -> (i32, i32) {
    %c0_i32 = arith.constant 0 : i32
    %c0_i32_0 = arith.constant 0 : i32
    return %arg0, %c0_i32 : i32, i32
  }
  func.func @transform_1(%arg0: i32) -> (i32, i32) {
    %c0_i32 = arith.constant 0 : i32
    %c0_i32_0 = arith.constant 0 : i32
    return %arg0, %c0_i32 : i32, i32
  }
}

</mosaic_0001>

<llo_original>
// kernel: tpu_custom_call.1
$region0: #{tpu_custom_call.1}
  #allocation0 [shape = 'u32[]', space=smem, size = 0x4, offset = 0x4, fixed_abs, tag = 'smem constant byte address 0x4 - core index']
  #allocation1 [shape = 'u32[144,128]{1,0:T(1,128)}', space=vmem, size = 0x12000, scoped, tag = 'internal scratch']
  %s0 = inlined_call_operand.hbm [shape: f32[512,512], index: 0, kind: input, shape index: {}]
  %s1 = inlined_call_operand.hbm [shape: f32[512,128], index: 1, kind: output, shape index: {}]
  %s2 = sld [smem:[#allocation0]]
  $region41: #{tpu_custom_call.1} parent=0
    _
  %s4 = ssub.s32 1, %s2
  %s5 = scalar_select 0, %s4, %s2
  $region1: #{tpu_custom_call.1} parent=0
    #allocation2 [shape = 'u8[524288]{0}', space=vmem, size = 0x80000, scoped, tag = 'input window, operand 0']
    #allocation3 [shape = 's32[2]{0}', space=sflag, size = 0x8, scoped, tag = 'scoped memory for tpu_custom_call.1']
    #allocation4 [shape = 's32[2]{0}', space=sflag, size = 0x8, scoped, tag = 'scoped memory for tpu_custom_call.1']
    #allocation5 [shape = 'u8[131072]{0}', space=vmem, size = 0x20000, scoped, tag = 'output window, operand 0']
    %6 = vsyncpa [#allocation3], 0
    %s7 = scalar_lea.sflag [#allocation3], 1
    %8 = vsyncpa %s7, 0
    %9 = vsyncpa [#allocation4], 0
    %s10 = scalar_lea.sflag [#allocation4], 1
    %11 = vsyncpa %s10, 0
    loop: start=0, step=1, limit=6
    $region2: #{tpu_custom_call.1} parent=1 // loop_pre_header
      _
    $region3: #{tpu_custom_call.1} parent=1 // loop_header
      %s13 = sphi 0, %s17
      %p14 = scmp.ge.s32.totalorder %s13, 6
      %s23 = sphi 0, %s25
      %s26 = sphi 0, %s23
      %s27 = sphi 0, %s26
      %s43 = sphi 0, %s27
      %s49 = sphi 0, %s51
      %s52 = sphi 0, %s49
      %s53 = sphi 0, %s52
      %s69 = sphi 0, %s53
    $region4: #{tpu_custom_call.1} parent=1 // loop_header_branch
      %16 = sbr.rel (%p14) target = $region8
    $region5: #{tpu_custom_call.1} parent=1 // loop_body
      %s18 = ssub.s32 %s13, 1
      %s19 = ssub.s32 %s13, 2
      %s20 = sadd.s32 %s13, 1
      %s21 = ssub.s32 %s13, %s20
      %p22 = scmp.eq.s32.totalorder %s21, 0
      %s24 = sadd.s32 %s23, 1
      %s25 = scalar_select %p22, %s23, %s24
      %p28 = pneg %p22
      %p29 = scmp.eq.s32.totalorder %s13, 3
      %p30 = por %p28, %p29
      %p31 = scmp.ne.s32.totalorder %s23, %s26
      %p32 = scmp.eq.s32.totalorder %s13, 0
      %p33 = por %p31, %p32
      %p34 = scmp.ne.s32.totalorder %s23, %s26
      %p35 = scmp.eq.s32.totalorder %s18, 3
      %p36 = por %p34, %p35
      %p37 = scmp.ne.s32.totalorder %s26, %s27
      %p38 = scmp.eq.s32.totalorder %s18, 0
      %p39 = por %p37, %p38
      %p40 = scmp.ne.s32.totalorder %s26, %s27
      %p41 = scmp.eq.s32.totalorder %s19, 3
      %p42 = por %p40, %p41
      %p44 = scmp.ne.s32.totalorder %s27, %s43
      %p45 = scmp.eq.s32.totalorder %s19, 0
      %p46 = por %p44, %p45
      %s47 = ssub.s32 %s13, %s20
      %p48 = scmp.eq.s32.totalorder %s47, 0
      %s50 = sadd.s32 %s49, 1
      %s51 = scalar_select %p48, %s49, %s50
      %p54 = pneg %p48
      %p55 = scmp.eq.s32.totalorder %s13, 3
      %p56 = por %p54, %p55
      %p57 = scmp.ne.s32.totalorder %s49, %s52
      %p58 = scmp.eq.s32.totalorder %s13, 0
      %p59 = por %p57, %p58
      %p60 = scmp.ne.s32.totalorder %s49, %s52
      %p61 = scmp.eq.s32.totalorder %s18, 3
      %p62 = por %p60, %p61
      %p63 = scmp.ne.s32.totalorder %s52, %s53
      %p64 = scmp.eq.s32.totalorder %s18, 0
      %p65 = por %p63, %p64
      %p66 = scmp.ne.s32.totalorder %s52, %s53
      %p67 = scmp.eq.s32.totalorder %s19, 3
      %p68 = por %p66, %p67
      %p70 = scmp.ne.s32.totalorder %s53, %s69
      %p71 = scmp.eq.s32.totalorder %s19, 0
      %p72 = por %p70, %p71
      %p73 = scmp.le.s32.totalorder 1, %s13
      %p74 = scmp.lt.s32.totalorder %s13, 5
      %p75 = pnand %p73, %p74
      %p76 = pneg %p75
      // Predicated region
      $region9: #{tpu_custom_call.1} parent=5 // pred_check
        _
      $region10: #{tpu_custom_call.1} parent=5 // pred_check_branch
        %78 = sbr.rel (%p75) target = $region12
      $region11: #{tpu_custom_call.1} parent=5 // pred_region
        %s79 = ssub.s32 %s13, 1
      $region12: #{tpu_custom_call.1} parent=5 // pred_fallthru
        _
      %p80 = scmp.lt.s32.totalorder %s13, 4
      // Predicated region
      $region13: #{tpu_custom_call.1} parent=5 // pred_check
        %p81 = pneg %p80
      $region14: #{tpu_custom_call.1} parent=5 // pred_check_branch
        %83 = sbr.rel (%p81) target = $region16
      $region15: #{tpu_custom_call.1} parent=5 // pred_region
        // Predicated region
        $region17: #{tpu_custom_call.1} parent=15 // pred_check
          %p84 = pneg %p33
        $region18: #{tpu_custom_call.1} parent=15 // pred_check_branch
          %86 = sbr.rel (%p84) target = $region20
        $region19: #{tpu_custom_call.1} parent=15 // pred_region
          %s87 = sand.u32 %s23, 1
          %s88 = scalar_lea.sflag [#allocation3], %s87
          %s89 = sand.u32 %s23, 1
          %s90 = smul.addr %s89, 512
          %s91 = scalar_lea.vmem [#allocation2], %s90
          %s92 = smul.u32 16, %s13
          %s94 = ssub.s32 8192, 8192
          %95 = vsyncadd %s88, %s94
          %s96 = smul.addr %s92, 4
          %s97 = smul.addr %s96, 128
          %s98 = scalar_lea.hbm %s0, %s97
          %s99 = sshll.u32 %s91, 4
          %s100 = int_to_ptr.vmem [resolvable:$true] %s99
          %105 = dma.hbm_to_vmem [thread:$0]  %s98, 8192, %s100, %s88, 512, 512, 32
        $region20: #{tpu_custom_call.1} parent=15 // pred_fallthru
          _
      $region16: #{tpu_custom_call.1} parent=5 // pred_fallthru
        _
      %p106 = scmp.le.s32.totalorder 1, %s13
      %p107 = scmp.lt.s32.totalorder %s13, 5
      %p108 = pnand %p106, %p107
      %p109 = pneg %p108
      // Predicated region
      $region21: #{tpu_custom_call.1} parent=5 // pred_check
        _
      $region22: #{tpu_custom_call.1} parent=5 // pred_check_branch
        %111 = sbr.rel (%p108) target = $region24
      $region23: #{tpu_custom_call.1} parent=5 // pred_region
        %s112 = ssub.s32 %s13, 1
        %s113 = sand.u32 %s26, 1
        %s114 = scalar_lea.sflag [#allocation3], %s113
        %s115 = sand.u32 %s26, 1
        %s116 = smul.addr %s115, 512
        %s117 = scalar_lea.vmem [#allocation2], %s116
        // Predicated region
        $region25: #{tpu_custom_call.1} parent=23 // pred_check
          %p118 = pneg %p39
        $region26: #{tpu_custom_call.1} parent=23 // pred_check_branch
          %120 = sbr.rel (%p118) target = $region28
        $region27: #{tpu_custom_call.1} parent=23 // pred_region
          %121 = dma.done %s114, 8192
        $region28: #{tpu_custom_call.1} parent=23 // pred_fallthru
          _
        %s122 = sand.u32 %s26, 1
        %s123 = scalar_lea.sflag [#allocation3], %s122
        %s124 = sand.u32 %s26, 1
        %s125 = smul.addr %s124, 512
        %s126 = scalar_lea.vmem [#allocation2], %s125
        %p127 = pneg %p39
        %p128 = pneg %p36
        %p129 = pneg %p65
        %p130 = pneg %p62
        %s131 = sand.u32 %s52, 1
        %s132 = scalar_lea.sflag [#allocation4], %s131
        %s133 = sand.u32 %s52, 1
        %s134 = smul.addr %s133, 128
        %s135 = scalar_lea.vmem [#allocation5], %s134
        %s136 = smul.u32 16, %s18
        %s137 = smul.u32 16, %s18
        %v138 = vld [vmem:[%s117] sm:$0xff]
        %v139 = vld [vmem:[%s117 + $0x20] sm:$0xff]
        %v140 = vld [vmem:[%s117 + $0x40] sm:$0xff]
        %v141 = vld [vmem:[%s117 + $0x60] sm:$0xff]
        %v142 = vld [vmem:[%s117 + $0x80] sm:$0xff]
        %v143 = vld [vmem:[%s117 + $0xa0] sm:$0xff]
        %v144 = vld [vmem:[%s117 + $0xc0] sm:$0xff]
        %v145 = vld [vmem:[%s117 + $0xe0] sm:$0xff]
        %v146 = vld [vmem:[%s117 + $0x100] sm:$0xff]
        %v147 = vld [vmem:[%s117 + $0x120] sm:$0xff]
        %v148 = vld [vmem:[%s117 + $0x140] sm:$0xff]
        %v149 = vld [vmem:[%s117 + $0x160] sm:$0xff]
        %v150 = vld [vmem:[%s117 + $0x180] sm:$0xff]
        %v151 = vld [vmem:[%s117 + $0x1a0] sm:$0xff]
        %v152 = vld [vmem:[%s117 + $0x1c0] sm:$0xff]
        %v153 = vld [vmem:[%s117 + $0x1e0] sm:$0xff]
        %v154 = vld [vmem:[%s117 + $0x8] sm:$0xff]
        %v155 = vld [vmem:[%s117 + $0x28] sm:$0xff]
        %v156 = vld [vmem:[%s117 + $0x48] sm:$0xff]
        %v157 = vld [vmem:[%s117 + $0x68] sm:$0xff]
        %v158 = vld [vmem:[%s117 + $0x88] sm:$0xff]
        %v159 = vld [vmem:[%s117 + $0xa8] sm:$0xff]
        %v160 = vld [vmem:[%s117 + $0xc8] sm:$0xff]
        %v161 = vld [vmem:[%s117 + $0xe8] sm:$0xff]
        %v162 = vld [vmem:[%s117 + $0x108] sm:$0xff]
        %v163 = vld [vmem:[%s117 + $0x128] sm:$0xff]
        %v164 = vld [vmem:[%s117 + $0x148] sm:$0xff]
        %v165 = vld [vmem:[%s117 + $0x168] sm:$0xff]
        %v166 = vld [vmem:[%s117 + $0x188] sm:$0xff]
        %v167 = vld [vmem:[%s117 + $0x1a8] sm:$0xff]
        %v168 = vld [vmem:[%s117 + $0x1c8] sm:$0xff]
        %v169 = vld [vmem:[%s117 + $0x1e8] sm:$0xff]
        %v170 = vld [vmem:[%s117 + $0x10] sm:$0xff]
        %v171 = vld [vmem:[%s117 + $0x30] sm:$0xff]
        %v172 = vld [vmem:[%s117 + $0x50] sm:$0xff]
        %v173 = vld [vmem:[%s117 + $0x70] sm:$0xff]
        %v174 = vld [vmem:[%s117 + $0x90] sm:$0xff]
        %v175 = vld [vmem:[%s117 + $0xb0] sm:$0xff]
        %v176 = vld [vmem:[%s117 + $0xd0] sm:$0xff]
        %v177 = vld [vmem:[%s117 + $0xf0] sm:$0xff]
        %v178 = vld [vmem:[%s117 + $0x110] sm:$0xff]
        %v179 = vld [vmem:[%s117 + $0x130] sm:$0xff]
        %v180 = vld [vmem:[%s117 + $0x150] sm:$0xff]
        %v181 = vld [vmem:[%s117 + $0x170] sm:$0xff]
        %v182 = vld [vmem:[%s117 + $0x190] sm:$0xff]
        %v183 = vld [vmem:[%s117 + $0x1b0] sm:$0xff]
        %v184 = vld [vmem:[%s117 + $0x1d0] sm:$0xff]
        %v185 = vld [vmem:[%s117 + $0x1f0] sm:$0xff]
        %v186 = vld [vmem:[%s117 + $0x18] sm:$0xff]
        %v187 = vld [vmem:[%s117 + $0x38] sm:$0xff]
        %v188 = vld [vmem:[%s117 + $0x58] sm:$0xff]
        %v189 = vld [vmem:[%s117 + $0x78] sm:$0xff]
        %v190 = vld [vmem:[%s117 + $0x98] sm:$0xff]
        %v191 = vld [vmem:[%s117 + $0xb8] sm:$0xff]
        %v192 = vld [vmem:[%s117 + $0xd8] sm:$0xff]
        %v193 = vld [vmem:[%s117 + $0xf8] sm:$0xff]
        %v194 = vld [vmem:[%s117 + $0x118] sm:$0xff]
        %v195 = vld [vmem:[%s117 + $0x138] sm:$0xff]
        %v196 = vld [vmem:[%s117 + $0x158] sm:$0xff]
        %v197 = vld [vmem:[%s117 + $0x178] sm:$0xff]
        %v198 = vld [vmem:[%s117 + $0x198] sm:$0xff]
        %v199 = vld [vmem:[%s117 + $0x1b8] sm:$0xff]
        %v200 = vld [vmem:[%s117 + $0x1d8] sm:$0xff]
        %v201 = vld [vmem:[%s117 + $0x1f8] sm:$0xff]
        %v202 = vadd.f32 %v138, %v154
        %v203 = vadd.f32 %v139, %v155
        %v204 = vadd.f32 %v140, %v156
        %v205 = vadd.f32 %v141, %v157
        %v206 = vadd.f32 %v142, %v158
        %v207 = vadd.f32 %v143, %v159
        %v208 = vadd.f32 %v144, %v160
        %v209 = vadd.f32 %v145, %v161
        %v210 = vadd.f32 %v146, %v162
        %v211 = vadd.f32 %v147, %v163
        %v212 = vadd.f32 %v148, %v164
        %v213 = vadd.f32 %v149, %v165
        %v214 = vadd.f32 %v150, %v166
        %v215 = vadd.f32 %v151, %v167
        %v216 = vadd.f32 %v152, %v168
        %v217 = vadd.f32 %v153, %v169
        %v218 = vadd.f32 %v170, %v186
        %v219 = vadd.f32 %v171, %v187
        %v220 = vadd.f32 %v172, %v188
        %v221 = vadd.f32 %v173, %v189
        %v222 = vadd.f32 %v174, %v190
        %v223 = vadd.f32 %v175, %v191
        %v224 = vadd.f32 %v176, %v192
        %v225 = vadd.f32 %v177, %v193
        %v226 = vadd.f32 %v178, %v194
        %v227 = vadd.f32 %v179, %v195
        %v228 = vadd.f32 %v180, %v196
        %v229 = vadd.f32 %v181, %v197
        %v230 = vadd.f32 %v182, %v198
        %v231 = vadd.f32 %v183, %v199
        %v232 = vadd.f32 %v184, %v200
        %v233 = vadd.f32 %v185, %v201
        %v234 = vadd.f32 %v202, %v218
        %v235 = vadd.f32 %v203, %v219
        %v236 = vadd.f32 %v204, %v220
        %v237 = vadd.f32 %v205, %v221
        %v238 = vadd.f32 %v206, %v222
        %v239 = vadd.f32 %v207, %v223
        %v240 = vadd.f32 %v208, %v224
        %v241 = vadd.f32 %v209, %v225
        %v242 = vadd.f32 %v210, %v226
        %v243 = vadd.f32 %v211, %v227
        %v244 = vadd.f32 %v212, %v228
        %v245 = vadd.f32 %v213, %v229
        %v246 = vadd.f32 %v214, %v230
        %v247 = vadd.f32 %v215, %v231
        %v248 = vadd.f32 %v216, %v232
        %v249 = vadd.f32 %v217, %v233
        %250 = vst [vmem:[%s135] sm:$0xff] %v234
        %251 = vst [vmem:[%s135 + $0x8] sm:$0xff] %v235
        %252 = vst [vmem:[%s135 + $0x10] sm:$0xff] %v236
        %253 = vst [vmem:[%s135 + $0x18] sm:$0xff] %v237
        %254 = vst [vmem:[%s135 + $0x20] sm:$0xff] %v238
        %255 = vst [vmem:[%s135 + $0x28] sm:$0xff] %v239
        %256 = vst [vmem:[%s135 + $0x30] sm:$0xff] %v240
        %257 = vst [vmem:[%s135 + $0x38] sm:$0xff] %v241
        %258 = vst [vmem:[%s135 + $0x40] sm:$0xff] %v242
        %259 = vst [vmem:[%s135 + $0x48] sm:$0xff] %v243
        %260 = vst [vmem:[%s135 + $0x50] sm:$0xff] %v244
        %261 = vst [vmem:[%s135 + $0x58] sm:$0xff] %v245
        %262 = vst [vmem:[%s135 + $0x60] sm:$0xff] %v246
        %263 = vst [vmem:[%s135 + $0x68] sm:$0xff] %v247
        %264 = vst [vmem:[%s135 + $0x70] sm:$0xff] %v248
        %265 = vst [vmem:[%s135 + $0x78] sm:$0xff] %v249
        %s266 = sand.u32 %s52, 1
        %s267 = scalar_lea.sflag [#allocation4], %s266
        %s268 = sand.u32 %s52, 1
        %s269 = smul.addr %s268, 128
        %s270 = scalar_lea.vmem [#allocation5], %s269
        // Predicated region
        $region29: #{tpu_custom_call.1} parent=23 // pred_check
          %p271 = pneg %p62
        $region30: #{tpu_custom_call.1} parent=23 // pred_check_branch
          %273 = sbr.rel (%p271) target = $region32
        $region31: #{tpu_custom_call.1} parent=23 // pred_region
          %s274 = smul.u32 16, %s18
          %s276 = ssub.s32 2048, 2048
          %277 = vsyncadd %s267, %s276
          %s278 = smul.addr %s274, 128
          %s279 = scalar_lea.hbm %s1, %s278
          %s280 = sshll.u32 %s270, 4
          %s281 = int_to_ptr.vmem [resolvable:$true] %s280
          %286 = dma.vmem_to_hbm [thread:$0]  %s281, 2048, %s279, %s267, 128, 128, 8
        $region32: #{tpu_custom_call.1} parent=23 // pred_fallthru
          _
      $region24: #{tpu_custom_call.1} parent=5 // pred_fallthru
        _
      %p287 = scmp.le.s32.totalorder 2, %s13
      // Predicated region
      $region33: #{tpu_custom_call.1} parent=5 // pred_check
        %p288 = pneg %p287
      $region34: #{tpu_custom_call.1} parent=5 // pred_check_branch
        %290 = sbr.rel (%p288) target = $region36
      $region35: #{tpu_custom_call.1} parent=5 // pred_region
        %s291 = ssub.s32 %s13, 2
        // Predicated region
        $region37: #{tpu_custom_call.1} parent=35 // pred_check
          %p292 = pneg %p68
        $region38: #{tpu_custom_call.1} parent=35 // pred_check_branch
          %294 = sbr.rel (%p292) target = $region40
        $region39: #{tpu_custom_call.1} parent=35 // pred_region
          %s295 = sand.u32 %s53, 1
          %s296 = scalar_lea.sflag [#allocation4], %s295
          %s297 = sand.u32 %s53, 1
          %s298 = smul.addr %s297, 128
          %s299 = scalar_lea.vmem [#allocation5], %s298
          %300 = dma.done %s296, 2048
        $region40: #{tpu_custom_call.1} parent=35 // pred_fallthru
          _
      $region36: #{tpu_custom_call.1} parent=5 // pred_fallthru
        _
    $region6: #{tpu_custom_call.1} parent=1 // loop_footer
      %s17 = sadd.s32 1, %s13
    $region7: #{tpu_custom_call.1} parent=1 // loop_footer_branch
      %12 = sbr.rel target = $region3
    $region8: #{tpu_custom_call.1} parent=1 // loop_exit
      _
    %301 = vsyncpa [#allocation3], 1
    %s302 = scalar_lea.sflag [#allocation3], 1
    %303 = vsyncpa %s302, 1
    %304 = vsyncpa [#allocation4], 1
    %s305 = scalar_lea.sflag [#allocation4], 1
    %306 = vsyncpa %s305, 1

</llo_original>
